<compile_context>
chip_gen: v7x
topology: tpu7x:2x2x1
jax: 0.10.0
libtpu: 0.0.40
codegen_flags: <defaults>
</compile_context>

<pallas_src>
import functools

import jax
import jax.numpy as jnp
import numpy as np
from jax.experimental import pallas as pl
from jax.experimental.pallas import tpu as pltpu


def _round_up(a: int, m: int) -> int:
    return ((a + m - 1) // m) * m


def routing_caps_kernel(x_ref, w_ref, seg_ref, segt_ref, o_ref, *, eps, compute_dtype):
    """One grid step = TB batch rows (lane-dense everywhere).

    x_ref    : (TB, N0*D0)    VMEM  flattened input capsules
    w_ref    : (N0*D0, N1*D1) VMEM  effective weight (bias row-sum folded in),
                                    constant index_map -> resident
    seg_ref  : (N1*D1, N1)    VMEM  0/1 lane->capsule segment matrix, resident
    segt_ref : (N1, N1*D1)    VMEM  its transpose, resident
    o_ref    : (TB, N1*D1)    VMEM  squashed output capsules
    """
    xv = x_ref[...]
    if compute_dtype is not None and xv.dtype != compute_dtype:
        # x stays in its HBM dtype; the narrow cast here is free VPU filler
        # instead of a separate wrapper-side XLA pass over x.
        xv = xv.astype(compute_dtype)

    # ---- entire routing forward == one MXU GEMM over K = N0*D0 ------------
    s = jnp.dot(xv, w_ref[...], preferred_element_type=jnp.float32)
    # s[b, k*D1 + l] == S[b, k, l] of the reference, before squash.

    # ---- squash epilogue, kept lane-dense ----------------------------------
    # Per-capsule squared norm is a segmented reduction over groups of D1
    # lanes; do it (and the broadcast back) with the resident 0/1 segment
    # matmuls so the (TB, N1*D1) value is never reshaped / relayouted and the
    # final store stays a plain full-width vst.
    sq = jnp.dot(s * s, seg_ref[...], preferred_element_type=jnp.float32)   # (TB, N1)
    # squash: out = S * sq / ((1 + sq) * (sqrt(sq) + eps))  (== reference math)
    scale = sq * pl.reciprocal((1.0 + sq) * (jnp.sqrt(sq) + eps), approx=True)
    scale_full = jnp.dot(scale, segt_ref[...], preferred_element_type=jnp.float32)

    o_ref[...] = (s * scale_full).astype(o_ref.dtype)


def fold_routing_weights(W, bias, *, compute_dtype=None):
    """Fold the (dead-in-this-forward) routing step into the weight.

    NOTE: exact ONLY for this exact forward: S is contracted over both i and z
    ('...kil,...kiz->...kl'), so each softmax row contributes exactly 1 and only
    sum_z b[k,i,z] survives.  If routing iterations or a z-matched contraction
    are ever added, this folding no longer applies.
    """
    N1, N0, D0, D1 = W.shape
    csum = 1.0 + jnp.sum(bias.astype(jnp.float32), axis=-1)          # (N1, N0)
    Weff = W.astype(jnp.float32) * csum[:, :, None, None]            # (N1,N0,D0,D1)
    W2 = jnp.transpose(Weff, (1, 2, 0, 3)).reshape(N0 * D0, N1 * D1)  # (K, N1*D1)
    if compute_dtype is not None:
        W2 = W2.astype(compute_dtype)   # tiny & resident -> always cast eagerly
    return W2


def routing_caps_forward(x, W, bias, *, eps: float = 1e-5, block_b: int = 1024,
                         min_split_rows: int = 256, compute_dtype=None, w2=None):
    """x: (B, N0, D0), W: (N1, N0, D0, D1), bias: (N1, N0, N0) -> (B, N1, D1)."""
    B, N0, D0 = x.shape
    N1, N0w, D0w, D1 = W.shape
    assert (N0w, D0w) == (N0, D0)
    K, ND = N0 * D0, N1 * D1

    cd = jnp.dtype(compute_dtype) if compute_dtype is not None else None

    # TODO(synk): for static parameters across many calls, precompute w2 once
    # via fold_routing_weights() and pass it in to skip this per-call fold.
    if w2 is None:
        w2 = fold_routing_weights(W, bias, compute_dtype=compute_dtype)

    x2 = x.reshape(B, K)   # free view; no wrapper-side astype / pad passes over x

    # Squash segment matrices: static in (N1, D1), built once at trace time and
    # DMA'd once (constant index_map -> resident like w2).
    lane_cap = np.arange(ND, dtype=np.int32) // D1
    seg_np = (lane_cap[:, None] == np.arange(N1, dtype=np.int32)[None, :]).astype(np.float32)
    seg = jnp.asarray(seg_np)                               # (N1*D1, N1)
    seg_t = jnp.asarray(np.ascontiguousarray(seg_np.T))     # (N1, N1*D1)

    # ---- batch tiling -------------------------------------------------------
    item = min(jnp.dtype(x2.dtype).itemsize, jnp.dtype(x.dtype).itemsize)
    sub = max(8, 32 // item)              # dtype-native sublane multiple
    block_b = max(sub, _round_up(block_b, sub))

    if B > block_b:
        tb = block_b                                        # many roofline-sized tiles
    elif B >= 2 * min_split_rows:
        # Whole batch would fit in one tile: split in two so the "parallel"
        # grid axis can shard across v7x's two TensorCores.
        tb = min(block_b, _round_up(pl.cdiv(B, 2), sub))
    else:
        tb = B                                              # single full-extent block

    grid = (pl.cdiv(B, tb),)   # ragged last tile handled by Pallas (masked writeback)

    out_item = jnp.dtype(x.dtype).itemsize
    cost = pl.CostEstimate(
        flops=2 * B * K * ND + 4 * B * ND * N1,
        transcendentals=2 * B * N1,
        bytes_accessed=(x2.size * x2.dtype.itemsize + w2.size * w2.dtype.itemsize
                        + (seg.size + seg_t.size) * 4 + B * ND * out_item),
    )

    kernel = functools.partial(routing_caps_kernel, eps=eps, compute_dtype=cd)

    out_flat = pl.pallas_call(
        kernel,
        out_shape=jax.ShapeDtypeStruct((B, ND), x.dtype),
        grid_spec=pltpu.PrefetchScalarGridSpec(
            num_scalar_prefetch=0,
            grid=grid,
            in_specs=[
                pl.BlockSpec((tb, K), lambda b: (b, 0)),     # batch tile of x
                pl.BlockSpec((K, ND), lambda b: (0, 0)),     # resident effective weight
                pl.BlockSpec((ND, N1), lambda b: (0, 0)),    # resident seg
                pl.BlockSpec((N1, ND), lambda b: (0, 0)),    # resident seg^T
            ],
            out_specs=pl.BlockSpec((tb, ND), lambda b: (b, 0)),
        ),
        compiler_params=pltpu.CompilerParams(
            dimension_semantics=("parallel",),               # batch tiles shard across TCs
        ),
        cost_estimate=cost,
    )(x2, w2, seg, seg_t)

    return out_flat.reshape(B, N1, D1)


def routing_caps_reference(x, W, bias, *, eps: float = 1e-5):
    """Plain-JAX reference mirroring the PyTorch forward exactly (incl. softmax)."""
    D0 = x.shape[-1]
    U = jnp.einsum("bij,kijl->bkil", x, W)
    A = jnp.einsum("bkil,bkzl->bkiz", U, U) / jnp.sqrt(jnp.float32(D0))
    C = jax.nn.softmax(A, axis=-1) + bias
    S = jnp.einsum("bkil,bkiz->bkl", U, C)
    sq = jnp.sum(S ** 2, axis=-1, keepdims=True)
    return (sq / (1.0 + sq)) * S / (jnp.sqrt(sq) + eps)


if __name__ == "__main__":
    # RoutingCaps(in_capsules=(8, 16), out_capsules=(10, 16)) -> K = N0*D0 = 128
    B, N0, D0 = 2, 8, 16
    N1, D1 = 10, 16

    key = jax.random.PRNGKey(0)
    kx, kw, kb, kx2, kx3 = jax.random.split(key, 5)

    x = jax.random.normal(kx, (B, N0, D0), dtype=jnp.float32)
    fan_in = N0 * D0 * D1              # kaiming_normal_-like std = sqrt(2 / fan_in)
    W = jax.random.normal(kw, (N1, N0, D0, D1), dtype=jnp.float32) * np.sqrt(2.0 / fan_in)
    # Module initializes b to zeros; use a small non-zero b so the bias row-sum
    # folding is actually exercised by the correctness checks.
    bias = 0.1 * jax.random.normal(kb, (N1, N0, N0), dtype=jnp.float32)

    # Tolerances are slightly looser than pure-f32 because the squash divide
    # uses the EUP approximate reciprocal (pl.reciprocal(approx=True)).
    out = jax.block_until_ready(routing_caps_forward(x, W, bias))
    ref = jax.block_until_ready(routing_caps_reference(x, W, bias))
    np.testing.assert_allclose(np.asarray(out), np.asarray(ref), rtol=3e-3, atol=3e-4)

    # Non-multiple batch with a small forced tile: multi-step "parallel" grid
    # with a ragged last tile (no wrapper-side padding copy).
    B2 = 19
    xb = jax.random.normal(kx2, (B2, N0, D0), dtype=jnp.float32)
    out2 = jax.block_until_ready(routing_caps_forward(xb, W, bias, block_b=8))
    ref2 = jax.block_until_ready(routing_caps_reference(xb, W, bias))
    np.testing.assert_allclose(np.asarray(out2), np.asarray(ref2), rtol=3e-3, atol=3e-4)

    # Exercise the "split one big tile into two so both v7x TCs get work" path.
    B3 = 40
    xc = jax.random.normal(kx3, (B3, N0, D0), dtype=jnp.float32)
    out3 = jax.block_until_ready(
        routing_caps_forward(xc, W, bias, block_b=64, min_split_rows=16))
    ref3 = jax.block_until_ready(routing_caps_reference(xc, W, bias))
    np.testing.assert_allclose(np.asarray(out3), np.asarray(ref3), rtol=3e-3, atol=3e-4)

    # bf16 compute path (W2 cast eagerly, x tile cast in-kernel), looser tolerance.
    out4 = jax.block_until_ready(
        routing_caps_forward(xb, W, bias, compute_dtype=jnp.bfloat16))
    np.testing.assert_allclose(np.asarray(out4), np.asarray(ref2), rtol=4e-2, atol=4e-3)

    print("KERNEL_OK")
</pallas_src>

<mosaic_0001>
module attributes {stable_mosaic.version = 11 : i64} {
  func.func @routing_caps_kernel(%arg0: i32, %arg1: memref<2x128xf32, #tpu.memory_space<vmem>>, %arg2: memref<128x160xf32, #tpu.memory_space<vmem>>, %arg3: memref<160x10xf32, #tpu.memory_space<vmem>>, %arg4: memref<10x160xf32, #tpu.memory_space<vmem>>, %arg5: memref<2x160xf32, #tpu.memory_space<vmem>>) attributes {dimension_semantics = [#tpu.dimension_semantics<parallel>], iteration_bounds = array<i64: 1>, scalar_prefetch = 0 : i64, scratch_operands = 0 : i64, tpu.core_type = #tpu.core_type<tc>, window_params = [{transform_indices = @transform_0, window_bounds = array<i64: 2, 128>}, {pipeline_mode = #tpu.pipeline_mode<synchronous>, transform_indices = @transform_1, window_bounds = array<i64: 128, 160>}, {pipeline_mode = #tpu.pipeline_mode<synchronous>, transform_indices = @transform_2, window_bounds = array<i64: 160, 10>}, {pipeline_mode = #tpu.pipeline_mode<synchronous>, transform_indices = @transform_3, window_bounds = array<i64: 10, 160>}, {transform_indices = @transform_4, window_bounds = array<i64: 2, 160>}]} {
    %c0 = arith.constant 0 : index
    %c0_0 = arith.constant 0 : index
    %0 = vector.load %arg1[%c0, %c0_0] : memref<2x128xf32, #tpu.memory_space<vmem>>, vector<2x128xf32>
    %c0_1 = arith.constant 0 : index
    %c0_2 = arith.constant 0 : index
    %1 = vector.load %arg2[%c0_1, %c0_2] : memref<128x160xf32, #tpu.memory_space<vmem>>, vector<128x160xf32>
    %cst = arith.constant dense<0.000000e+00> : vector<2x160xf32>
    %2 = tpu.matmul %0, %1, %cst {dimension_numbers = #tpu.dot_dimension_numbers<[1], [0], [0], [1], [0, 0, 1, 1], [], []>} : vector<2x128xf32>, vector<128x160xf32>, vector<2x160xf32> -> vector<2x160xf32>
    %3 = arith.mulf %2, %2 : vector<2x160xf32>
    %c0_3 = arith.constant 0 : index
    %c0_4 = arith.constant 0 : index
    %4 = vector.load %arg3[%c0_3, %c0_4] : memref<160x10xf32, #tpu.memory_space<vmem>>, vector<160x10xf32>
    %cst_5 = arith.constant dense<0.000000e+00> : vector<2x10xf32>
    %5 = tpu.matmul %3, %4, %cst_5 {dimension_numbers = #tpu.dot_dimension_numbers<[1], [0], [0], [1], [0, 0, 1, 1], [], []>} : vector<2x160xf32>, vector<160x10xf32>, vector<2x10xf32> -> vector<2x10xf32>
    %cst_6 = arith.constant 1.000000e+00 : f32
    %6 = vector.broadcast %cst_6 : f32 to vector<2x10xf32>
    %7 = arith.addf %6, %5 : vector<2x10xf32>
    %8 = math.sqrt %5 : vector<2x10xf32>
    %cst_7 = arith.constant 9.99999974E-6 : f32
    %9 = vector.broadcast %cst_7 : f32 to vector<2x10xf32>
    %10 = arith.addf %8, %9 : vector<2x10xf32>
    %11 = arith.mulf %7, %10 : vector<2x10xf32>
    %12 = tpu.reciprocal %11 {approx = true} : vector<2x10xf32> -> vector<2x10xf32>
    %13 = arith.mulf %5, %12 : vector<2x10xf32>
    %c0_8 = arith.constant 0 : index
    %c0_9 = arith.constant 0 : index
    %14 = vector.load %arg4[%c0_8, %c0_9] : memref<10x160xf32, #tpu.memory_space<vmem>>, vector<10x160xf32>
    %cst_10 = arith.constant dense<0.000000e+00> : vector<2x160xf32>
    %15 = tpu.matmul %13, %14, %cst_10 {dimension_numbers = #tpu.dot_dimension_numbers<[1], [0], [0], [1], [0, 0, 1, 1], [], []>} : vector<2x10xf32>, vector<10x160xf32>, vector<2x160xf32> -> vector<2x160xf32>
    %16 = arith.mulf %2, %15 : vector<2x160xf32>
    %c0_11 = arith.constant 0 : index
    %c0_12 = arith.constant 0 : index
    %17 = vector.load %arg5[%c0_11, %c0_12] : memref<2x160xf32, #tpu.memory_space<vmem>>, vector<2x160xf32>
    tpu.vector_store %arg5[%c0_11, %c0_12], %16 {strides = array<i32>} : memref<2x160xf32, #tpu.memory_space<vmem>>, vector<2x160xf32>,
    return
  }
  func.func @transform_0(%arg0: i32) -> (i32, i32) {
    %c0_i32 = arith.constant 0 : i32
    %c0_i32_0 = arith.constant 0 : i32
    return %arg0, %c0_i32 : i32, i32
  }
  func.func @transform_1(%arg0: i32) -> (i32, i32) {
    %c0_i32 = arith.constant 0 : i32
    %c0_i32_0 = arith.constant 0 : i32
    %c0_i32_1 = arith.constant 0 : i32
    return %c0_i32, %c0_i32_0 : i32, i32
  }
  func.func @transform_2(%arg0: i32) -> (i32, i32) {
    %c0_i32 = arith.constant 0 : i32
    %c0_i32_0 = arith.constant 0 : i32
    %c0_i32_1 = arith.constant 0 : i32
    return %c0_i32, %c0_i32_0 : i32, i32
  }
  func.func @transform_3(%arg0: i32) -> (i32, i32) {
    %c0_i32 = arith.constant 0 : i32
    %c0_i32_0 = arith.constant 0 : i32
    %c0_i32_1 = arith.constant 0 : i32
    return %c0_i32, %c0_i32_0 : i32, i32
  }
  func.func @transform_4(%arg0: i32) -> (i32, i32) {
    %c0_i32 = arith.constant 0 : i32
    %c0_i32_0 = arith.constant 0 : i32
    return %arg0, %c0_i32 : i32, i32
  }
}

</mosaic_0001>

<llo_original>
// kernel: tpu_custom_call.1
$region0: #{tpu_custom_call.1}
  #allocation0 [shape = 'u32[]', space=smem, size = 0x4, offset = 0x4, fixed_abs, tag = 'smem constant byte address 0x4 - core index']
  #allocation1 [shape = 'u32[144,128]{1,0:T(1,128)}', space=vmem, size = 0x12000, scoped, tag = 'internal scratch']
  %s0 = inlined_call_operand.vmem [shape: f32[2,128], index: 0, kind: input, shape index: {}]
  %s1 = inlined_call_operand.vmem [shape: f32[128,160], index: 1, kind: input, shape index: {}]
  %s2 = inlined_call_operand.vmem [shape: f32[160,10], index: 2, kind: input, shape index: {}]
  %s3 = inlined_call_operand.vmem [shape: f32[10,160], index: 3, kind: input, shape index: {}]
  %s4 = inlined_call_operand.hbm [shape: f32[2,160], index: 4, kind: output, shape index: {}]
  %s5 = sld [smem:[#allocation0]]
  $region26: #{tpu_custom_call.1} parent=0
    _
  %s7 = ssub.s32 1, %s5
  %s8 = scalar_select 0, %s7, %s5
  $region1: #{tpu_custom_call.1} parent=0
    #allocation2 [shape = 'u8[2048]{0}', space=vmem, size = 0x800, scoped, tag = 'output window, operand 0, single buffered']
    #allocation3 [shape = 's32[1]{0}', space=sflag, size = 0x4, scoped, tag = 'scoped memory for tpu_custom_call.1']
    %9 = vsyncpa [#allocation3], 0
    // Predicated region
    $region2: #{tpu_custom_call.1} parent=1 // pred_check
      _
    $region3: #{tpu_custom_call.1} parent=1 // pred_check_branch
      %11 = sbr.rel (0) target = $region5
    $region4: #{tpu_custom_call.1} parent=1 // pred_region
      _
    $region5: #{tpu_custom_call.1} parent=1 // pred_fallthru
      _
    // Predicated region
    $region6: #{tpu_custom_call.1} parent=1 // pred_check
      _
    $region7: #{tpu_custom_call.1} parent=1 // pred_check_branch
      %13 = sbr.rel (0) target = $region9
    $region8: #{tpu_custom_call.1} parent=1 // pred_region
      _
    $region9: #{tpu_custom_call.1} parent=1 // pred_fallthru
      _
    // Predicated region
    $region10: #{tpu_custom_call.1} parent=1 // pred_check
      _
    $region11: #{tpu_custom_call.1} parent=1 // pred_check_branch
      %15 = sbr.rel (0) target = $region13
    $region12: #{tpu_custom_call.1} parent=1 // pred_region
      _
    $region13: #{tpu_custom_call.1} parent=1 // pred_fallthru
      _
    // Predicated region
    $region14: #{tpu_custom_call.1} parent=1 // pred_check
      _
    $region15: #{tpu_custom_call.1} parent=1 // pred_check_branch
      %17 = sbr.rel (0) target = $region17
    $region16: #{tpu_custom_call.1} parent=1 // pred_region
      _
    $region17: #{tpu_custom_call.1} parent=1 // pred_fallthru
      _
    %v18 = vld [vmem:[%s0] sm:$0x3]
    %v19 = vld [vmem:[%s1] sm:$0xff]
    %v20 = vld [vmem:[%s1 + $0x8] sm:$0xff]
    %v21 = vld [vmem:[%s1 + $0x10] sm:$0xff]
    %v22 = vld [vmem:[%s1 + $0x18] sm:$0xff]
    %v23 = vld [vmem:[%s1 + $0x20] sm:$0xff]
    %v24 = vld [vmem:[%s1 + $0x28] sm:$0xff]
    %v25 = vld [vmem:[%s1 + $0x30] sm:$0xff]
    %v26 = vld [vmem:[%s1 + $0x38] sm:$0xff]
    %v27 = vld [vmem:[%s1 + $0x40] sm:$0xff]
    %v28 = vld [vmem:[%s1 + $0x48] sm:$0xff]
    %v29 = vld [vmem:[%s1 + $0x50] sm:$0xff]
    %v30 = vld [vmem:[%s1 + $0x58] sm:$0xff]
    %v31 = vld [vmem:[%s1 + $0x60] sm:$0xff]
    %v32 = vld [vmem:[%s1 + $0x68] sm:$0xff]
    %v33 = vld [vmem:[%s1 + $0x70] sm:$0xff]
    %v34 = vld [vmem:[%s1 + $0x78] sm:$0xff]
    %v35 = vld [vmem:[%s1 + $0x80] sm:$0xff]
    %v36 = vld [vmem:[%s1 + $0x88] sm:$0xff]
    %v37 = vld [vmem:[%s1 + $0x90] sm:$0xff]
    %v38 = vld [vmem:[%s1 + $0x98] sm:$0xff]
    %v39 = vld [vmem:[%s1 + $0xa0] sm:$0xff]
    %v40 = vld [vmem:[%s1 + $0xa8] sm:$0xff]
    %v41 = vld [vmem:[%s1 + $0xb0] sm:$0xff]
    %v42 = vld [vmem:[%s1 + $0xb8] sm:$0xff]
    %v43 = vld [vmem:[%s1 + $0xc0] sm:$0xff]
    %v44 = vld [vmem:[%s1 + $0xc8] sm:$0xff]
    %v45 = vld [vmem:[%s1 + $0xd0] sm:$0xff]
    %v46 = vld [vmem:[%s1 + $0xd8] sm:$0xff]
    %v47 = vld [vmem:[%s1 + $0xe0] sm:$0xff]
    %v48 = vld [vmem:[%s1 + $0xe8] sm:$0xff]
    %v49 = vld [vmem:[%s1 + $0xf0] sm:$0xff]
    %v50 = vld [vmem:[%s1 + $0xf8] sm:$0xff]
    %51 = vmatprep.subr.mxu0 %v20
    %52 = vmatpush1.msra.mxu0 %v19
    %53 = vmatprep.subr.mxu0 %v22
    %54 = vmatpush1.msra.mxu0 %v21
    %55 = vmatprep.subr.mxu0 %v24
    %56 = vmatpush1.msra.mxu0 %v23
    %57 = vmatprep.subr.mxu0 %v26
    %58 = vmatpush1.msra.mxu0 %v25
    %59 = vmatprep.subr.mxu0 %v28
    %60 = vmatpush1.msra.mxu0 %v27
    %61 = vmatprep.subr.mxu0 %v30
    %62 = vmatpush1.msra.mxu0 %v29
    %63 = vmatprep.subr.mxu0 %v32
    %64 = vmatpush1.msra.mxu0 %v31
    %65 = vmatprep.subr.mxu0 %v34
    %66 = vmatpush1.msra.mxu0 %v33
    %67 = vmatprep.subr.mxu0 %v36
    %68 = vmatpush1.msra.mxu0 %v35
    %69 = vmatprep.subr.mxu0 %v38
    %70 = vmatpush1.msra.mxu0 %v37
    %71 = vmatprep.subr.mxu0 %v40
    %72 = vmatpush1.msra.mxu0 %v39
    %73 = vmatprep.subr.mxu0 %v42
    %74 = vmatpush1.msra.mxu0 %v41
    %75 = vmatprep.subr.mxu0 %v44
    %76 = vmatpush1.msra.mxu0 %v43
    %77 = vmatprep.subr.mxu0 %v46
    %78 = vmatpush1.msra.mxu0 %v45
    %79 = vmatprep.subr.mxu0 %v48
    %80 = vmatpush1.msra.mxu0 %v47
    %81 = vmatprep.subr.mxu0 %v50
    %82 = vmatpush1.msra.mxu0 %v49
    %83 = vmatprep.subr.mxu0 0.0
    %84 = vmatpush1.msra.mxu0 0.0
    %85 = vmatprep.subr.mxu0 0.0
    %86 = vmatpush1.msra.mxu0 0.0
    %87 = vmatprep.subr.mxu0 0.0
    %88 = vmatpush1.msra.mxu0 0.0
    %89 = vmatprep.subr.mxu0 0.0
    %90 = vmatpush1.msra.mxu0 0.0
    %91 = vmatprep.subr.mxu0 0.0
    %92 = vmatpush1.msra.mxu0 0.0
    %93 = vmatprep.subr.mxu0 0.0
    %94 = vmatpush1.msra.mxu0 0.0
    %95 = vmatprep.subr.mxu0 0.0
    %96 = vmatpush1.msra.mxu0 0.0
    %97 = vmatprep.subr.mxu0 0.0
    %98 = vmatpush1.msra.mxu0 0.0
    %99 = vmatprep.subr.mxu0 0.0
    %100 = vmatpush1.msra.mxu0 0.0
    %101 = vmatprep.subr.mxu0 0.0
    %102 = vmatpush1.msra.mxu0 0.0
    %103 = vmatprep.subr.mxu0 0.0
    %104 = vmatpush1.msra.mxu0 0.0
    %105 = vmatprep.subr.mxu0 0.0
    %106 = vmatpush1.msra.mxu0 0.0
    %107 = vmatprep.subr.mxu0 0.0
    %108 = vmatpush1.msra.mxu0 0.0
    %109 = vmatprep.subr.mxu0 0.0
    %110 = vmatpush1.msra.mxu0 0.0
    %111 = vmatprep.subr.mxu0 0.0
    %112 = vmatpush1.msra.mxu0 0.0
    %113 = vmatprep.subr.mxu0 0.0
    %114 = vmatpush1.msra.mxu0 0.0
    %115 = vmatprep.mubr.f32.mxu0 0.0
    %116 = vmatmul.mubr.f32.gmra.mrb[0].mxu0 %v18
    %v117 = vpop.f32.mrb[0].mxu0
    %v118 = vadd.f32 0.0, %v117
    %v119 = vpop.f32.mrb[0].mxu0
    %v120 = vadd.f32 0.0, %v119
    %121 = vdwg.mxu0
    %v122 = vmul.f32 %v118, %v118
    %v123 = vmul.f32 %v120, %v120
    %v124 = vld [vmem:[%s2] sm:$0xff]
    %v125 = vld [vmem:[%s2 + $0x8] sm:$0xff]
    %v126 = vld [vmem:[%s2 + $0x10] sm:$0xff]
    %v127 = vld [vmem:[%s2 + $0x18] sm:$0xff]
    %v128 = vld [vmem:[%s2 + $0x20] sm:$0xff]
    %v129 = vld [vmem:[%s2 + $0x28] sm:$0xff]
    %v130 = vld [vmem:[%s2 + $0x30] sm:$0xff]
    %v131 = vld [vmem:[%s2 + $0x38] sm:$0xff]
    %v132 = vld [vmem:[%s2 + $0x40] sm:$0xff]
    %v133 = vld [vmem:[%s2 + $0x48] sm:$0xff]
    %v134 = vld [vmem:[%s2 + $0x50] sm:$0xff]
    %v135 = vld [vmem:[%s2 + $0x58] sm:$0xff]
    %v136 = vld [vmem:[%s2 + $0x60] sm:$0xff]
    %v137 = vld [vmem:[%s2 + $0x68] sm:$0xff]
    %v138 = vld [vmem:[%s2 + $0x70] sm:$0xff]
    %v139 = vld [vmem:[%s2 + $0x78] sm:$0xff]
    %v140 = vld [vmem:[%s2 + $0x80] sm:$0xff]
    %v141 = vld [vmem:[%s2 + $0x88] sm:$0xff]
    %v142 = vld [vmem:[%s2 + $0x90] sm:$0xff]
    %v143 = vld [vmem:[%s2 + $0x98] sm:$0xff]
    %vm144 = vcmask 261120
    %v146 = vsel %vm144, %v123, 0
    %148 = vmatprep.subr.mxu0 0.0
    %149 = vmatpush1.msra.mxu0 %v124
    %150 = vmatprep.subr.mxu0 0.0
    %151 = vmatpush1.msra.mxu0 %v125
    %152 = vmatprep.subr.mxu0 0.0
    %153 = vmatpush1.msra.mxu0 %v126
    %154 = vmatprep.subr.mxu0 0.0
    %155 = vmatpush1.msra.mxu0 %v127
    %156 = vmatprep.subr.mxu0 0.0
    %157 = vmatpush1.msra.mxu0 %v128
    %158 = vmatprep.subr.mxu0 0.0
    %159 = vmatpush1.msra.mxu0 %v129
    %160 = vmatprep.subr.mxu0 0.0
    %161 = vmatpush1.msra.mxu0 %v130
    %162 = vmatprep.subr.mxu0 0.0
    %163 = vmatpush1.msra.mxu0 %v131
    %164 = vmatprep.subr.mxu0 0.0
    %165 = vmatpush1.msra.mxu0 %v132
    %166 = vmatprep.subr.mxu0 0.0
    %167 = vmatpush1.msra.mxu0 %v133
    %168 = vmatprep.subr.mxu0 0.0
    %169 = vmatpush1.msra.mxu0 %v134
    %170 = vmatprep.subr.mxu0 0.0
    %171 = vmatpush1.msra.mxu0 %v135
    %172 = vmatprep.subr.mxu0 0.0
    %173 = vmatpush1.msra.mxu0 %v136
    %174 = vmatprep.subr.mxu0 0.0
    %175 = vmatpush1.msra.mxu0 %v137
    %176 = vmatprep.subr.mxu0 0.0
    %177 = vmatpush1.msra.mxu0 %v138
    %178 = vmatprep.subr.mxu0 0.0
    %179 = vmatpush1.msra.mxu0 %v139
    %180 = vmatprep.subr.mxu0 0.0
    %181 = vmatpush1.msra.mxu0 %v140
    %182 = vmatprep.subr.mxu0 0.0
    %183 = vmatpush1.msra.mxu0 %v141
    %184 = vmatprep.subr.mxu0 0.0
    %185 = vmatpush1.msra.mxu0 %v142
    %186 = vmatprep.subr.mxu0 0.0
    %187 = vmatpush1.msra.mxu0 %v143
    %188 = vmatprep.subr.mxu0 0.0
    %189 = vmatpush1.msra.mxu0 0.0
    %190 = vmatprep.subr.mxu0 0.0
    %191 = vmatpush1.msra.mxu0 0.0
    %192 = vmatprep.subr.mxu0 0.0
    %193 = vmatpush1.msra.mxu0 0.0
    %194 = vmatprep.subr.mxu0 0.0
    %195 = vmatpush1.msra.mxu0 0.0
    %196 = vmatprep.subr.mxu0 0.0
    %197 = vmatpush1.msra.mxu0 0.0
    %198 = vmatprep.subr.mxu0 0.0
    %199 = vmatpush1.msra.mxu0 0.0
    %200 = vmatprep.subr.mxu0 0.0
    %201 = vmatpush1.msra.mxu0 0.0
    %202 = vmatprep.subr.mxu0 0.0
    %203 = vmatpush1.msra.mxu0 0.0
    %204 = vmatprep.subr.mxu0 0.0
    %205 = vmatpush1.msra.mxu0 0.0
    %206 = vmatprep.subr.mxu0 0.0
    %207 = vmatpush1.msra.mxu0 0.0
    %208 = vmatprep.subr.mxu0 0.0
    %209 = vmatpush1.msra.mxu0 0.0
    %210 = vmatprep.subr.mxu0 0.0
    %211 = vmatpush1.msra.mxu0 0.0
    %212 = vmatprep.mubr.f32.mxu0 %v146
    %213 = vmatmul.mubr.f32.gmra.mrb[0].mxu0 %v122
    %v214 = vpop.f32.mrb[0].mxu0
    %v215 = vadd.f32 0.0, %v214
    %v216 = vpop.f32.mrb[0].mxu0
    %217 = vdwg.mxu0
    %v218 = vadd.f32 %v215, 1.0
    %v219 = vrsqrt.pop %v215
    %v220 = vmul.f32 %v215, %v219
    %vm221 = vcmp.eq.f32.partialorder %v215, inf
    %v222 = vsel %vm221, %v215, %v220
    %vm223 = vcmp.eq.f32.partialorder %v215, 0.0
    %v224 = vand.u32 %v215, 2147483648
    %v225 = vsel %vm223, %v224, %v222
    %v226 = vadd.f32 %v225, 1e-05
    %v227 = vmul.f32 %v218, %v226
    %v228 = vrcp.pop %v227
    %v229 = vmul.f32 %v215, %v228
    %v230 = vld [vmem:[%s3] sm:$0xff]
    %v231 = vld [vmem:[%s3 + $0x8] sm:$0xff]
    %v232 = vld [vmem:[%s3 + $0x10] sm:$0x3]
    %v233 = vld [vmem:[%s3 + $0x18] sm:$0x3]
    %vm234 = vcmask 80896
    %v236 = vsel %vm234, %v229, 0
    %vm238 = vcmask 1041408
    %v240 = vsel %vm238, %v232, 0
    %v243 = vsel %vm238, %v233, 0
    %245 = vmatprep.subr.mxu0 %v231
    %246 = vmatpush1.msra.mxu0 %v230
    %247 = vmatprep.subr.mxu0 %v243
    %248 = vmatpush1.msra.mxu0 %v240
    %249 = vmatprep.subr.mxu0 0.0
    %250 = vmatpush1.msra.mxu0 0.0
    %251 = vmatprep.subr.mxu0 0.0
    %252 = vmatpush1.msra.mxu0 0.0
    %253 = vmatprep.subr.mxu0 0.0
    %254 = vmatpush1.msra.mxu0 0.0
    %255 = vmatprep.subr.mxu0 0.0
    %256 = vmatpush1.msra.mxu0 0.0
    %257 = vmatprep.subr.mxu0 0.0
    %258 = vmatpush1.msra.mxu0 0.0
    %259 = vmatprep.subr.mxu0 0.0
    %260 = vmatpush1.msra.mxu0 0.0
    %261 = vmatprep.subr.mxu0 0.0
    %262 = vmatpush1.msra.mxu0 0.0
    %263 = vmatprep.subr.mxu0 0.0
    %264 = vmatpush1.msra.mxu0 0.0
    %265 = vmatprep.subr.mxu0 0.0
    %266 = vmatpush1.msra.mxu0 0.0
    %267 = vmatprep.subr.mxu0 0.0
    %268 = vmatpush1.msra.mxu0 0.0
    %269 = vmatprep.subr.mxu0 0.0
    %270 = vmatpush1.msra.mxu0 0.0
    %271 = vmatprep.subr.mxu0 0.0
    %272 = vmatpush1.msra.mxu0 0.0
    %273 = vmatprep.subr.mxu0 0.0
    %274 = vmatpush1.msra.mxu0 0.0
    %275 = vmatprep.subr.mxu0 0.0
    %276 = vmatpush1.msra.mxu0 0.0
    %277 = vmatprep.subr.mxu0 0.0
    %278 = vmatpush1.msra.mxu0 0.0
    %279 = vmatprep.subr.mxu0 0.0
    %280 = vmatpush1.msra.mxu0 0.0
    %281 = vmatprep.subr.mxu0 0.0
    %282 = vmatpush1.msra.mxu0 0.0
    %283 = vmatprep.subr.mxu0 0.0
    %284 = vmatpush1.msra.mxu0 0.0
    %285 = vmatprep.subr.mxu0 0.0
    %286 = vmatpush1.msra.mxu0 0.0
    %287 = vmatprep.subr.mxu0 0.0
    %288 = vmatpush1.msra.mxu0 0.0
    %289 = vmatprep.subr.mxu0 0.0
    %290 = vmatpush1.msra.mxu0 0.0
    %291 = vmatprep.subr.mxu0 0.0
    %292 = vmatpush1.msra.mxu0 0.0
    %293 = vmatprep.subr.mxu0 0.0
    %294 = vmatpush1.msra.mxu0 0.0
    %295 = vmatprep.subr.mxu0 0.0
    %296 = vmatpush1.msra.mxu0 0.0
    %297 = vmatprep.subr.mxu0 0.0
    %298 = vmatpush1.msra.mxu0 0.0
    %299 = vmatprep.subr.mxu0 0.0
    %300 = vmatpush1.msra.mxu0 0.0
    %301 = vmatprep.subr.mxu0 0.0
    %302 = vmatpush1.msra.mxu0 0.0
    %303 = vmatprep.subr.mxu0 0.0
    %304 = vmatpush1.msra.mxu0 0.0
    %305 = vmatprep.subr.mxu0 0.0
    %306 = vmatpush1.msra.mxu0 0.0
    %307 = vmatprep.subr.mxu0 0.0
    %308 = vmatpush1.msra.mxu0 0.0
    %309 = vmatprep.mubr.f32.mxu0 0.0
    %310 = vmatmul.mubr.f32.gmra.mrb[0].mxu0 %v236
    %v311 = vpop.f32.mrb[0].mxu0
    %v312 = vadd.f32 0.0, %v311
    %v313 = vpop.f32.mrb[0].mxu0
    %v314 = vadd.f32 0.0, %v313
    %315 = vdwg.mxu0
    %v316 = vmul.f32 %v118, %v312
    %v317 = vmul.f32 %v120, %v314
    %v320 = vcombine.low %v316, %v317
    %v322 = vunpack.c.l.s4 1983009808
    %v323 = vunpack.c.0.s8 %v322
    %v324 = vlaneseq
    %v325 = vshrl.u32 %v324, 7
    %v326 = vsub.s32 %v323, %v325
    %v327 = vrot.slane %v320, %v326
    %vm329 = vcmask 257026
    %vm330 = vmor %vm329, %vm238
    %331 = vst.msk [vmem:[#allocation2] sm:$0xf] %vm330, %v327
    // Predicated region
    $region18: #{tpu_custom_call.1} parent=1 // pred_check
      _
    $region19: #{tpu_custom_call.1} parent=1 // pred_check_branch
      %333 = sbr.rel (0) target = $region21
    $region20: #{tpu_custom_call.1} parent=1 // pred_region
      %s335 = ssub.s32 64, 64
      %336 = vsyncadd [#allocation3], %s335
      %s338 = sshll.u32 [#allocation2], 4
      %s339 = int_to_ptr.vmem [resolvable:$true] %s338
      %341 = dma.vmem_to_hbm [thread:$0]  %s339, 64, %s4, [#allocation3]
    $region21: #{tpu_custom_call.1} parent=1 // pred_fallthru
      _
    // Predicated region
    $region22: #{tpu_custom_call.1} parent=1 // pred_check
      _
    $region23: #{tpu_custom_call.1} parent=1 // pred_check_branch
      %343 = sbr.rel (0) target = $region25
    $region24: #{tpu_custom_call.1} parent=1 // pred_region
      %344 = dma.done [#allocation3], 64
    $region25: #{tpu_custom_call.1} parent=1 // pred_fallthru
      _
    %345 = vsyncpa [#allocation3], 1

</llo_original>
